<compile_context>
chip_gen: v5e
topology: v5e:2x2
jax: 0.10.0
libtpu: 0.0.40
codegen_flags: <defaults>
</compile_context>

<pallas_src>
import jax
import jax.numpy as jnp
from jax import lax
from jax.experimental import pallas as pl
from jax.experimental.pallas import tpu as pltpu

LANES = 128  # TPU vreg lane width


def _make_kernel(inner_rows, n_inner):
    """Kernel over one (tile, 128) block of interleaved samples.

    x_ref  : (tile, 128) native-dtype block; lane 4*j + c = channel c of sample j.
    c_hi/lo: (128, 32) bf16 hi/lo halves of the packing matrix C,
             C[4*j + c, j] = w_eff[c].
    o_ref  : (tile, 32) f32 block; column j = output of sample j of each row.
    """

    def kernel(x_ref, c_hi_ref, c_lo_ref, o_ref):
        c_hi = c_hi_ref[...]
        c_lo = c_lo_ref[...]

        def compute(x_blk):
            xf = x_blk.astype(jnp.float32)
            # Exact two-term bf16 decomposition of x; together with the hi/lo
            # split of C the three single-pass MXU matmuls below recover
            # f32-level accuracy (dropped cross term ~2^-16 of term magnitudes).
            x_hi = xf.astype(jnp.bfloat16)
            x_lo = (xf - x_hi.astype(jnp.float32)).astype(jnp.bfloat16)
            acc = jnp.dot(x_hi, c_hi, preferred_element_type=jnp.float32)
            acc = acc + jnp.dot(x_lo, c_hi, preferred_element_type=jnp.float32)
            acc = acc + jnp.dot(x_hi, c_lo, preferred_element_type=jnp.float32)
            return acc

        if n_inner == 1:
            o_ref[...] = compute(x_ref[...]).astype(o_ref.dtype)
        else:
            # Chunk the (large) block so per-chunk intermediates stay small in
            # VMEM; a rolled fori_loop bounds their live ranges.
            def body(h, carry):
                off = pl.multiple_of(h * inner_rows, inner_rows)
                x_blk = x_ref[pl.ds(off, inner_rows), :]
                o_ref[pl.ds(off, inner_rows), :] = compute(x_blk).astype(o_ref.dtype)
                return carry

            lax.fori_loop(0, n_inner, body, 0, unroll=False)

    return kernel


def mydense_forward(x, params, *, target_tile_rows=8192, inner_rows=2048):
    """x: (N, 4) float array; params: [(4,4),(4,4),(4,4),(4,1)] -> (N, 1) float32."""
    n, k = x.shape
    assert LANES % k == 0, "channel count must divide the 128-lane vreg width"
    spr = LANES // k  # samples per 128-lane row (32 for k=4)

    # Fold the whole linear chain into one (k,) effective weight vector
    # (no nonlinearity between the torch.mm's -> a single linear map).
    # HIGHEST precision so the tiny fold itself is exact f32.
    w_eff = params[0].astype(jnp.float32)
    for w in params[1:]:
        w_eff = jnp.dot(w_eff, w.astype(jnp.float32),
                        precision=lax.Precision.HIGHEST)
    w_eff = w_eff.reshape(-1)  # (k,)

    n_main = (n // spr) * spr
    out_main = None

    if n_main > 0:
        # Prefix slice only materializes a copy when N is not a multiple of 32.
        x_main = x if n_main == n else x[:n_main]
        rows = n_main // spr
        # FREE row-major view: row r holds samples 32r..32r+31, channels
        # interleaved along lanes (lane 4*j + c).  No transpose, no cast.
        x_view = x_main.reshape(rows, LANES)

        # ---- tiling --------------------------------------------------------
        if rows <= 16:
            tile, grid_n, n_inner = rows, 1, 1
            inner = tile
        else:
            # >= 2 grid steps so both v7x TensorCores get work ("parallel" axis).
            grid_n = max(2, pl.cdiv(rows, target_tile_rows))
            tile = pl.cdiv(rows, grid_n)
            if tile > inner_rows:
                tile = pl.cdiv(tile, inner_rows) * inner_rows
                n_inner = tile // inner_rows
                inner = inner_rows
            else:
                tile = pl.cdiv(tile, 8) * 8  # (8, 128) block-shape rule
                n_inner = 1
                inner = tile
            # Last block may be partial; Pallas masks the edge.  All math is
            # row-local, so junk rows never contaminate valid outputs.
            grid_n = pl.cdiv(rows, tile)

        # ---- packing matrix: applies w_eff AND de-interleaves 4-lane groups.
        lane = jnp.arange(LANES)
        col = jnp.arange(spr)
        c_full = jnp.where(
            (lane[:, None] // k) == col[None, :],
            w_eff[lane % k][:, None],
            0.0,
        ).astype(jnp.float32)                          # (128, spr)
        c_hi = c_full.astype(jnp.bfloat16)
        c_lo = (c_full - c_hi.astype(jnp.float32)).astype(jnp.bfloat16)

        out2d = pl.pallas_call(
            _make_kernel(inner, n_inner),
            out_shape=jax.ShapeDtypeStruct((rows, spr), jnp.float32),
            grid=(grid_n,),
            in_specs=[
                pl.BlockSpec((tile, LANES), lambda i: (i, 0)),  # streamed x
                pl.BlockSpec((LANES, spr), lambda i: (0, 0)),   # resident C_hi
                pl.BlockSpec((LANES, spr), lambda i: (0, 0)),   # resident C_lo
            ],
            out_specs=pl.BlockSpec((tile, spr), lambda i: (i, 0)),
            compiler_params=pltpu.CompilerParams(
                dimension_semantics=("parallel",),  # megacore sharding on v7x
                vmem_limit_bytes=40 * 1024 * 1024,
            ),
        )(x_view, c_hi, c_lo)
        out_main = out2d.reshape(n_main, 1)  # free reshape, already sample order

    if n_main == n:
        return out_main

    # Ragged tail (< 32 samples): negligible work, exact elementwise f32 math.
    # Only this (rare) path pays a concat copy of the output.
    tail = (x[n_main:].astype(jnp.float32) * w_eff[None, :]).sum(
        axis=-1, keepdims=True)
    if out_main is None:
        return tail
    return jnp.concatenate([out_main, tail], axis=0)


if __name__ == "__main__":
    key = jax.random.PRNGKey(0)
    k_x, k0, k1, k2, k3 = jax.random.split(key, 5)

    # Deterministic "torch.randn"-style init at the shapes from __init__.
    params = [
        jax.random.normal(k0, (4, 4), dtype=jnp.float32),
        jax.random.normal(k1, (4, 4), dtype=jnp.float32),
        jax.random.normal(k2, (4, 4), dtype=jnp.float32),
        jax.random.normal(k3, (4, 1), dtype=jnp.float32),
    ]

    def ref_forward(xx):
        # HIGHEST precision so the f32 reference is not itself bf16-truncated
        # by XLA's default TPU matmul precision.
        r = xx.astype(jnp.float32)
        for w in params:
            r = jnp.dot(r, w, precision=lax.Precision.HIGHEST)
        return r

    def check(nrows, **kw):
        xx = jax.random.normal(jax.random.fold_in(k_x, nrows), (nrows, 4),
                               dtype=jnp.float32)
        out = jax.block_until_ready(mydense_forward(xx, params, **kw))
        assert out.shape == (nrows, 1), out.shape
        ref = ref_forward(xx)
        # Kernel uses an exact bf16 hi/lo split on the MXU: worst-case abs error
        # on these O(10) magnitudes is ~1e-3, so 1e-2/1e-2 is comfortable while
        # still catching any real layout / weight / indexing bug.
        assert jnp.allclose(out, ref, atol=1e-2, rtol=1e-2), (
            float(jnp.max(jnp.abs(out - ref))))

    check(256)      # single tiny block (full-extent BlockSpec path)
    check(2304)     # multi-step "parallel" grid with a partial last block
    check(523)      # ragged tail (< 32 samples) handled outside the kernel
    check(262144)   # big batch: 2 grid steps + in-kernel fori_loop chunking

    print("KERNEL_OK")
</pallas_src>

<mosaic_0001>
module attributes {stable_mosaic.version = 11 : i64} {
  func.func @kernel(%arg0: i32, %arg1: memref<8x128xf32, #tpu.memory_space<vmem>>, %arg2: memref<128x32xbf16, #tpu.memory_space<vmem>>, %arg3: memref<128x32xbf16, #tpu.memory_space<vmem>>, %arg4: memref<8x32xf32, #tpu.memory_space<vmem>>) attributes {dimension_semantics = [#tpu.dimension_semantics<parallel>], iteration_bounds = array<i64: 1>, scalar_prefetch = 0 : i64, scratch_operands = 0 : i64, tpu.core_type = #tpu.core_type<tc>, window_params = [{transform_indices = @transform_0, window_bounds = array<i64: 8, 128>}, {pipeline_mode = #tpu.pipeline_mode<synchronous>, transform_indices = @transform_1, window_bounds = array<i64: 128, 32>}, {pipeline_mode = #tpu.pipeline_mode<synchronous>, transform_indices = @transform_2, window_bounds = array<i64: 128, 32>}, {transform_indices = @transform_3, window_bounds = array<i64: 8, 32>}]} {
    %c0 = arith.constant 0 : index
    %c0_0 = arith.constant 0 : index
    %0 = vector.load %arg2[%c0, %c0_0] : memref<128x32xbf16, #tpu.memory_space<vmem>>, vector<128x32xbf16>
    %c0_1 = arith.constant 0 : index
    %c0_2 = arith.constant 0 : index
    %1 = vector.load %arg3[%c0_1, %c0_2] : memref<128x32xbf16, #tpu.memory_space<vmem>>, vector<128x32xbf16>
    %c0_3 = arith.constant 0 : index
    %c0_4 = arith.constant 0 : index
    %2 = vector.load %arg1[%c0_3, %c0_4] : memref<8x128xf32, #tpu.memory_space<vmem>>, vector<8x128xf32>
    %3 = arith.truncf %2 : vector<8x128xf32> to vector<8x128xbf16>
    %4 = arith.extf %3 : vector<8x128xbf16> to vector<8x128xf32>
    %5 = arith.subf %2, %4 : vector<8x128xf32>
    %6 = arith.truncf %5 : vector<8x128xf32> to vector<8x128xbf16>
    %cst = arith.constant dense<0.000000e+00> : vector<8x32xf32>
    %7 = tpu.matmul %3, %0, %cst {dimension_numbers = #tpu.dot_dimension_numbers<[1], [0], [0], [1], [0, 0, 1, 1], [], []>} : vector<8x128xbf16>, vector<128x32xbf16>, vector<8x32xf32> -> vector<8x32xf32>
    %cst_5 = arith.constant dense<0.000000e+00> : vector<8x32xf32>
    %8 = tpu.matmul %6, %0, %cst_5 {dimension_numbers = #tpu.dot_dimension_numbers<[1], [0], [0], [1], [0, 0, 1, 1], [], []>} : vector<8x128xbf16>, vector<128x32xbf16>, vector<8x32xf32> -> vector<8x32xf32>
    %9 = arith.addf %7, %8 : vector<8x32xf32>
    %cst_6 = arith.constant dense<0.000000e+00> : vector<8x32xf32>
    %10 = tpu.matmul %3, %1, %cst_6 {dimension_numbers = #tpu.dot_dimension_numbers<[1], [0], [0], [1], [0, 0, 1, 1], [], []>} : vector<8x128xbf16>, vector<128x32xbf16>, vector<8x32xf32> -> vector<8x32xf32>
    %11 = arith.addf %9, %10 : vector<8x32xf32>
    %c0_7 = arith.constant 0 : index
    %c0_8 = arith.constant 0 : index
    %12 = vector.load %arg4[%c0_7, %c0_8] : memref<8x32xf32, #tpu.memory_space<vmem>>, vector<8x32xf32>
    tpu.vector_store %arg4[%c0_7, %c0_8], %11 {strides = array<i32>} : memref<8x32xf32, #tpu.memory_space<vmem>>, vector<8x32xf32>,
    return
  }
  func.func @transform_0(%arg0: i32) -> (i32, i32) {
    %c0_i32 = arith.constant 0 : i32
    %c0_i32_0 = arith.constant 0 : i32
    return %arg0, %c0_i32 : i32, i32
  }
  func.func @transform_1(%arg0: i32) -> (i32, i32) {
    %c0_i32 = arith.constant 0 : i32
    %c0_i32_0 = arith.constant 0 : i32
    %c0_i32_1 = arith.constant 0 : i32
    return %c0_i32, %c0_i32_0 : i32, i32
  }
  func.func @transform_2(%arg0: i32) -> (i32, i32) {
    %c0_i32 = arith.constant 0 : i32
    %c0_i32_0 = arith.constant 0 : i32
    %c0_i32_1 = arith.constant 0 : i32
    return %c0_i32, %c0_i32_0 : i32, i32
  }
  func.func @transform_3(%arg0: i32) -> (i32, i32) {
    %c0_i32 = arith.constant 0 : i32
    %c0_i32_0 = arith.constant 0 : i32
    return %arg0, %c0_i32 : i32, i32
  }
}

</mosaic_0001>

<llo_original>
// kernel: tpu_custom_call.1
$region0: #{tpu_custom_call.1}
  #allocation0 [shape = 'u32[]', space=smem, size = 0x4, offset = 0x4, fixed_abs, tag = 'smem constant byte address 0x4 - core index']
  #allocation1 [shape = 'u32[72,128]{1,0:T(1,128)}', space=vmem, size = 0x9000, scoped, tag = 'internal scratch']
  %s0 = inlined_call_operand.vmem [shape: f32[8,128], index: 0, kind: input, shape index: {}]
  %s1 = inlined_call_operand.vmem [shape: bf16[128,32], index: 1, kind: input, shape index: {}]
  %s2 = inlined_call_operand.vmem [shape: bf16[128,32], index: 2, kind: input, shape index: {}]
  %s3 = inlined_call_operand.hbm [shape: f32[8,32], index: 3, kind: output, shape index: {}]
  %s4 = sld [smem:[#allocation0]]
  $region22: #{tpu_custom_call.1} parent=0
    _
  %s6 = ssub.s32 1, %s4
  %s7 = scalar_select 0, %s6, %s4
  $region1: #{tpu_custom_call.1} parent=0
    #allocation2 [shape = 'u8[4096]{0}', space=vmem, size = 0x1000, scoped, tag = 'output window, operand 0, single buffered']
    #allocation3 [shape = 's32[1]{0}', space=sflag, size = 0x4, scoped, tag = 'scoped memory for tpu_custom_call.1']
    %8 = vsyncpa [#allocation3], 0
    // Predicated region
    $region2: #{tpu_custom_call.1} parent=1 // pred_check
      _
    $region3: #{tpu_custom_call.1} parent=1 // pred_check_branch
      %10 = sbr.rel (0) target = $region5
    $region4: #{tpu_custom_call.1} parent=1 // pred_region
      _
    $region5: #{tpu_custom_call.1} parent=1 // pred_fallthru
      _
    // Predicated region
    $region6: #{tpu_custom_call.1} parent=1 // pred_check
      _
    $region7: #{tpu_custom_call.1} parent=1 // pred_check_branch
      %12 = sbr.rel (0) target = $region9
    $region8: #{tpu_custom_call.1} parent=1 // pred_region
      _
    $region9: #{tpu_custom_call.1} parent=1 // pred_fallthru
      _
    // Predicated region
    $region10: #{tpu_custom_call.1} parent=1 // pred_check
      _
    $region11: #{tpu_custom_call.1} parent=1 // pred_check_branch
      %14 = sbr.rel (0) target = $region13
    $region12: #{tpu_custom_call.1} parent=1 // pred_region
      _
    $region13: #{tpu_custom_call.1} parent=1 // pred_fallthru
      _
    %v15 = vld [vmem:[%s1] sm:$0xf]
    %v16 = vld [vmem:[%s1 + $0x4] sm:$0xf]
    %v17 = vld [vmem:[%s1 + $0x8] sm:$0xf]
    %v18 = vld [vmem:[%s1 + $0xc] sm:$0xf]
    %v19 = vld [vmem:[%s1 + $0x10] sm:$0xf]
    %v20 = vld [vmem:[%s1 + $0x14] sm:$0xf]
    %v21 = vld [vmem:[%s1 + $0x18] sm:$0xf]
    %v22 = vld [vmem:[%s1 + $0x1c] sm:$0xf]
    %v23 = vld [vmem:[%s1 + $0x20] sm:$0xf]
    %v24 = vld [vmem:[%s1 + $0x24] sm:$0xf]
    %v25 = vld [vmem:[%s1 + $0x28] sm:$0xf]
    %v26 = vld [vmem:[%s1 + $0x2c] sm:$0xf]
    %v27 = vld [vmem:[%s1 + $0x30] sm:$0xf]
    %v28 = vld [vmem:[%s1 + $0x34] sm:$0xf]
    %v29 = vld [vmem:[%s1 + $0x38] sm:$0xf]
    %v30 = vld [vmem:[%s1 + $0x3c] sm:$0xf]
    %v31 = vld [vmem:[%s2] sm:$0xf]
    %v32 = vld [vmem:[%s2 + $0x4] sm:$0xf]
    %v33 = vld [vmem:[%s2 + $0x8] sm:$0xf]
    %v34 = vld [vmem:[%s2 + $0xc] sm:$0xf]
    %v35 = vld [vmem:[%s2 + $0x10] sm:$0xf]
    %v36 = vld [vmem:[%s2 + $0x14] sm:$0xf]
    %v37 = vld [vmem:[%s2 + $0x18] sm:$0xf]
    %v38 = vld [vmem:[%s2 + $0x1c] sm:$0xf]
    %v39 = vld [vmem:[%s2 + $0x20] sm:$0xf]
    %v40 = vld [vmem:[%s2 + $0x24] sm:$0xf]
    %v41 = vld [vmem:[%s2 + $0x28] sm:$0xf]
    %v42 = vld [vmem:[%s2 + $0x2c] sm:$0xf]
    %v43 = vld [vmem:[%s2 + $0x30] sm:$0xf]
    %v44 = vld [vmem:[%s2 + $0x34] sm:$0xf]
    %v45 = vld [vmem:[%s2 + $0x38] sm:$0xf]
    %v46 = vld [vmem:[%s2 + $0x3c] sm:$0xf]
    %v47 = vld [vmem:[%s0] sm:$0xff]
    %v48 = vpack.c.bf16 %v47, %v47
    %v49 = vunpack.c.l.bf16 %v48
    %v50 = vsub.f32 %v47, %v49
    %v51 = vpack.c.bf16 %v50, %v50
    %v68 = vunpack.c.l.b16 %v15
    %v69 = vunpack.c.l.b16 %v16
    %v70 = vunpack.c.l.b16 %v17
    %v71 = vunpack.c.l.b16 %v18
    %v72 = vunpack.c.l.b16 %v19
    %v73 = vunpack.c.l.b16 %v20
    %v74 = vunpack.c.l.b16 %v21
    %v75 = vunpack.c.l.b16 %v22
    %v76 = vunpack.c.l.b16 %v23
    %v77 = vunpack.c.l.b16 %v24
    %v78 = vunpack.c.l.b16 %v25
    %v79 = vunpack.c.l.b16 %v26
    %v80 = vunpack.c.l.b16 %v27
    %v81 = vunpack.c.l.b16 %v28
    %v82 = vunpack.c.l.b16 %v29
    %v83 = vunpack.c.l.b16 %v30
    %v84 = vpack.c.b16 %v69, %v68
    %v85 = vpack.c.b16 %v71, %v70
    %v86 = vpack.c.b16 %v73, %v72
    %v87 = vpack.c.b16 %v75, %v74
    %v88 = vpack.c.b16 %v77, %v76
    %v89 = vpack.c.b16 %v79, %v78
    %v90 = vpack.c.b16 %v81, %v80
    %v91 = vpack.c.b16 %v83, %v82
    %100 = vmatpush.bf16.msra.mxu0 %v91
    %101 = vmatpush.bf16.msra.mxu0 %v90
    %102 = vmatpush.bf16.msra.mxu0 %v89
    %103 = vmatpush.bf16.msra.mxu0 %v88
    %104 = vmatpush.bf16.msra.mxu0 %v87
    %105 = vmatpush.bf16.msra.mxu0 %v86
    %106 = vmatpush.bf16.msra.mxu0 %v85
    %107 = vmatpush.bf16.msra.mxu0 %v84
    %108 = vmatmul.bf16.gmra.mxu0 %v51
    %v109 = vpop.f32.mrf.mxu0
    %v110 = vadd.f32 0.0, %v109
    %v111 = vpop.f32.mrf.mxu0
    %112 = vdwg.mxu0
    %113 = vmatpush.bf16.msra.mxu0 %v91
    %114 = vmatpush.bf16.msra.mxu0 %v90
    %115 = vmatpush.bf16.msra.mxu0 %v89
    %116 = vmatpush.bf16.msra.mxu0 %v88
    %117 = vmatpush.bf16.msra.mxu0 %v87
    %118 = vmatpush.bf16.msra.mxu0 %v86
    %119 = vmatpush.bf16.msra.mxu0 %v85
    %120 = vmatpush.bf16.msra.mxu0 %v84
    %121 = vmatmul.bf16.gmra.mxu0 %v48
    %v122 = vpop.f32.mrf.mxu0
    %v123 = vadd.f32 %v110, %v122
    %v124 = vpop.f32.mrf.mxu0
    %125 = vdwg.mxu0
    %v142 = vunpack.c.l.b16 %v31
    %v143 = vunpack.c.l.b16 %v32
    %v144 = vunpack.c.l.b16 %v33
    %v145 = vunpack.c.l.b16 %v34
    %v146 = vunpack.c.l.b16 %v35
    %v147 = vunpack.c.l.b16 %v36
    %v148 = vunpack.c.l.b16 %v37
    %v149 = vunpack.c.l.b16 %v38
    %v150 = vunpack.c.l.b16 %v39
    %v151 = vunpack.c.l.b16 %v40
    %v152 = vunpack.c.l.b16 %v41
    %v153 = vunpack.c.l.b16 %v42
    %v154 = vunpack.c.l.b16 %v43
    %v155 = vunpack.c.l.b16 %v44
    %v156 = vunpack.c.l.b16 %v45
    %v157 = vunpack.c.l.b16 %v46
    %v158 = vpack.c.b16 %v143, %v142
    %v159 = vpack.c.b16 %v145, %v144
    %v160 = vpack.c.b16 %v147, %v146
    %v161 = vpack.c.b16 %v149, %v148
    %v162 = vpack.c.b16 %v151, %v150
    %v163 = vpack.c.b16 %v153, %v152
    %v164 = vpack.c.b16 %v155, %v154
    %v165 = vpack.c.b16 %v157, %v156
    %174 = vmatpush.bf16.msra.mxu0 %v165
    %175 = vmatpush.bf16.msra.mxu0 %v164
    %176 = vmatpush.bf16.msra.mxu0 %v163
    %177 = vmatpush.bf16.msra.mxu0 %v162
    %178 = vmatpush.bf16.msra.mxu0 %v161
    %179 = vmatpush.bf16.msra.mxu0 %v160
    %180 = vmatpush.bf16.msra.mxu0 %v159
    %181 = vmatpush.bf16.msra.mxu0 %v158
    %182 = vmatmul.bf16.gmra.mxu0 %v48
    %v183 = vpop.f32.mrf.mxu0
    %v184 = vadd.f32 0.0, %v183
    %v185 = vpop.f32.mrf.mxu0
    %186 = vdwg.mxu0
    %v187 = vadd.f32 %v123, %v184
    %vm188 = vcmask 261120
    %189 = vst.msk [vmem:[#allocation2] sm:$0xff] %vm188, %v187
    // Predicated region
    $region14: #{tpu_custom_call.1} parent=1 // pred_check
      _
    $region15: #{tpu_custom_call.1} parent=1 // pred_check_branch
      %191 = sbr.rel (0) target = $region17
    $region16: #{tpu_custom_call.1} parent=1 // pred_region
      %193 = vsyncadd [#allocation3], 0
      %s195 = sshll.u32 [#allocation2], 4
      %s196 = int_to_ptr.vmem [resolvable:$true] %s195
      %s197 = sshll.u32 %s3, 4
      %s198 = int_to_ptr.hbm [resolvable:$true] %s197
      %200 = dma.vmem_to_hbm [thread:$0]  %s196, 128, %s198, [#allocation3]
    $region17: #{tpu_custom_call.1} parent=1 // pred_fallthru
      _
    // Predicated region
    $region18: #{tpu_custom_call.1} parent=1 // pred_check
      _
    $region19: #{tpu_custom_call.1} parent=1 // pred_check_branch
      %202 = sbr.rel (0) target = $region21
    $region20: #{tpu_custom_call.1} parent=1 // pred_region
      %204 = dma.done [#allocation3], 128
    $region21: #{tpu_custom_call.1} parent=1 // pred_fallthru
      _
    %205 = vsyncpa [#allocation3], 1

</llo_original>
